<compile_context>
chip_gen: v6e
topology: v6e:2x2x1
jax: 0.10.0
libtpu: 0.0.40
codegen_flags: <defaults>
</compile_context>

<pallas_src>
import functools

import jax
import jax.numpy as jnp
from jax.experimental import pallas as pl
from jax.experimental.pallas import tpu as pltpu


def _sandwich_kernel(x_ref, akront_ref, wcatt_ref, bcat_ref, wgt_ref,
                     w1t_ref, w2t_ref, b2_ref, o_ref, *, d_model):
    # x_ref block: [1, C_in, M] with M = N*T columns (column index = n*T + t), bf16.
    # Everything below is channel-major: activations are [channels, M] (lane-dense).
    D = d_model
    xT = x_ref[0]                                                       # [C_in, M]

    # Encoder ------------------------------------------------------------
    # fused start + skip 1x1 convs: W_catT = [W_start^T ; W_skip^T], one matmul.
    hw = jnp.dot(wcatt_ref[...], xT,
                 preferred_element_type=jnp.float32) + bcat_ref[...]    # [2D, M] f32
    hT = hw[:D, :]                                                      # start conv + bias
    skipT = hw[D:, :]                                                   # skip conv

    # graph conv for all time steps at once: hT @ (A (x) I_T)^T  -- single MXU matmul
    gcT = jnp.dot(hT.astype(jnp.bfloat16), akront_ref[...],
                  preferred_element_type=jnp.float32)                   # [D, M]
    encT = jax.nn.relu(jnp.dot(wgt_ref[...], gcT.astype(jnp.bfloat16),
                               preferred_element_type=jnp.float32))     # [D, M]

    # Decoder ------------------------------------------------------------
    decT = jax.nn.relu(encT + skipT)                                    # f32 VPU math
    hidT = jax.nn.relu(jnp.dot(w1t_ref[...], decT.astype(jnp.bfloat16),
                               preferred_element_type=jnp.float32))     # [D, M]
    yT = jnp.dot(w2t_ref[...], hidT.astype(jnp.bfloat16),
                 preferred_element_type=jnp.float32) + b2_ref[...]      # [128, M]

    o_ref[0] = yT                                                       # lane-dense store


def sandwich_gnn_forward(x_nchw, A, params):
    """x_nchw: [B, C_in, N, T] f32.  A: [N, N] f32.  Returns [B, C_out, N, T] f32."""
    B, C_in, N, T = x_nchw.shape
    D = params["W_start"].shape[1]
    C_out = params["W_end2"].shape[1]
    C_pad = 128                      # padded output-channel count (sublane dim)
    M = N * T

    # glue: NCHW -> [B, C_in, N*T] is a PURE reshape (no transpose); bf16 for the MXU.
    xT = x_nchw.reshape(B, C_in, M).astype(jnp.bfloat16)

    # (A (x) I_T)^T = A^T (x) I_T: per-time graph conv over node-major/time-minor columns
    # becomes a single [D, M] x [M, M] matmul inside the kernel.
    a_kron_t = jnp.kron(A.T, jnp.eye(T, dtype=A.dtype)).astype(jnp.bfloat16)  # [M, M]

    # fuse start/skip projections (transposed); pad final projection + bias to 128 rows.
    w_cat_t = jnp.concatenate([params["W_start"].T, params["W_skip"].T],
                              axis=0).astype(jnp.bfloat16)                    # [2D, C_in]
    b_cat = jnp.concatenate([params["b_start"].T,
                             jnp.zeros((D, 1), jnp.float32)], axis=0)         # [2D, 1] f32
    w2t = jnp.zeros((C_pad, D), jnp.float32).at[:C_out, :].set(
        params["W_end2"].T).astype(jnp.bfloat16)                              # [128, D]
    b2t = jnp.zeros((C_pad, 1), jnp.float32).at[:C_out, :].set(params["b_end2"].T)

    full = lambda shape: pl.BlockSpec(shape, lambda b: (0,) * len(shape))

    out_t = pl.pallas_call(
        functools.partial(_sandwich_kernel, d_model=D),
        out_shape=jax.ShapeDtypeStruct((B, C_pad, M), jnp.float32),
        grid_spec=pltpu.PrefetchScalarGridSpec(
            num_scalar_prefetch=0,
            grid=(B,),                                   # one step per batch element
            in_specs=[
                pl.BlockSpec((1, C_in, M), lambda b: (b, 0, 0)),  # x (channel-major)
                full((M, M)),            # (A (x) I_T)^T
                full((2 * D, C_in)),     # W_cat^T (start|skip fused)
                full((2 * D, 1)),        # b_cat
                full((D, D)),            # W_gc^T
                full((D, D)),            # W_end1^T
                full((C_pad, D)),        # W_end2^T (padded to 128 rows)
                full((C_pad, 1)),        # b_end2  (padded)
            ],
            out_specs=pl.BlockSpec((1, C_pad, M), lambda b: (b, 0, 0)),
        ),
        compiler_params=pltpu.CompilerParams(
            dimension_semantics=("parallel",)),          # v7x: B=2 -> 2 TensorCores
    )(xT, a_kron_t, w_cat_t, b_cat,
      params["W_gc"].T.astype(jnp.bfloat16),
      params["W_end1"].T.astype(jnp.bfloat16),
      w2t, b2t)

    # glue back: slice off the channel padding; [B, C_out, N*T] -> NCHW is a pure reshape.
    return out_t[:, :C_out, :].reshape(B, C_out, N, T)


def init_params(key, c_in, d_model, c_out):
    ks = jax.random.split(key, 7)
    scale = 0.1
    return {
        "W_start": scale * jax.random.normal(ks[0], (c_in, d_model), jnp.float32),
        "b_start": scale * jax.random.normal(ks[1], (1, d_model), jnp.float32),
        "W_gc":    scale * jax.random.normal(ks[2], (d_model, d_model), jnp.float32),
        "W_skip":  scale * jax.random.normal(ks[3], (c_in, d_model), jnp.float32),
        "W_end1":  scale * jax.random.normal(ks[4], (d_model, d_model), jnp.float32),
        "W_end2":  scale * jax.random.normal(ks[5], (d_model, c_out), jnp.float32),
        "b_end2":  scale * jax.random.normal(ks[6], (1, c_out), jnp.float32),
    }


def _sandwich_reference(x_nchw, A, params):
    """Pure-JAX f32 reference of the same sandwich forward."""
    x = jnp.transpose(x_nchw, (0, 3, 2, 1))                         # [B, T, N, C_in]
    h = jnp.einsum("btnc,cd->btnd", x, params["W_start"]) + params["b_start"]
    gc = jnp.einsum("nm,btmd->btnd", A, h)
    enc = jax.nn.relu(jnp.einsum("btnd,de->btne", gc, params["W_gc"]))
    skip = jnp.einsum("btnc,cd->btnd", x, params["W_skip"])
    dec = jax.nn.relu(enc + skip)
    hid = jax.nn.relu(jnp.einsum("btnd,de->btne", dec, params["W_end1"]))
    y = jnp.einsum("btnd,dk->btnk", hid, params["W_end2"]) + params["b_end2"]
    return jnp.transpose(y, (0, 3, 2, 1))                           # [B, C_out, N, T]


if __name__ == "__main__":
    # Small shapes consistent with the module defaults (seq_len=12, d_model=32).
    B, C_in, N, T = 2, 4, 16, 12
    d_model = 32
    C_out = 12   # prediction horizon

    key = jax.random.PRNGKey(0)
    kx, ka, kp = jax.random.split(key, 3)

    x = jax.random.normal(kx, (B, C_in, N, T), jnp.float32)          # NCHW input
    A_raw = jax.random.uniform(ka, (N, N), jnp.float32)
    A = A_raw / jnp.sum(A_raw, axis=1, keepdims=True)                # row-normalized adjacency

    params = init_params(kp, C_in, d_model, C_out)

    fwd = jax.jit(sandwich_gnn_forward)
    y = jax.block_until_ready(fwd(x, A, params))
    assert y.shape == (B, C_out, N, T)
    assert bool(jnp.all(jnp.isfinite(y)))

    # correctness vs f32 reference (tolerance covers bf16 MXU rounding).
    y_ref = _sandwich_reference(x, A, params)
    err = float(jnp.max(jnp.abs(y - y_ref)))
    assert err < 5e-2, f"max abs error vs reference too large: {err}"

    print("KERNEL_OK")
</pallas_src>

<mosaic_0001>
module attributes {stable_mosaic.version = 11 : i64} {
  func.func @_sandwich_kernel(%arg0: i32, %arg1: memref<1x4x192xbf16, #tpu.memory_space<vmem>>, %arg2: memref<192x192xbf16, #tpu.memory_space<vmem>>, %arg3: memref<64x4xbf16, #tpu.memory_space<vmem>>, %arg4: memref<64x1xf32, #tpu.memory_space<vmem>>, %arg5: memref<32x32xbf16, #tpu.memory_space<vmem>>, %arg6: memref<32x32xbf16, #tpu.memory_space<vmem>>, %arg7: memref<128x32xbf16, #tpu.memory_space<vmem>>, %arg8: memref<128x1xf32, #tpu.memory_space<vmem>>, %arg9: memref<1x128x192xf32, #tpu.memory_space<vmem>>) attributes {dimension_semantics = [#tpu.dimension_semantics<parallel>], iteration_bounds = array<i64: 2>, scalar_prefetch = 0 : i64, scratch_operands = 0 : i64, tpu.core_type = #tpu.core_type<tc>, window_params = [{transform_indices = @transform_0, window_bounds = array<i64: 1, 4, 192>}, {pipeline_mode = #tpu.pipeline_mode<synchronous>, transform_indices = @transform_1, window_bounds = array<i64: 192, 192>}, {pipeline_mode = #tpu.pipeline_mode<synchronous>, transform_indices = @transform_2, window_bounds = array<i64: 64, 4>}, {pipeline_mode = #tpu.pipeline_mode<synchronous>, transform_indices = @transform_3, window_bounds = array<i64: 64, 1>}, {pipeline_mode = #tpu.pipeline_mode<synchronous>, transform_indices = @transform_4, window_bounds = array<i64: 32, 32>}, {pipeline_mode = #tpu.pipeline_mode<synchronous>, transform_indices = @transform_5, window_bounds = array<i64: 32, 32>}, {pipeline_mode = #tpu.pipeline_mode<synchronous>, transform_indices = @transform_6, window_bounds = array<i64: 128, 32>}, {pipeline_mode = #tpu.pipeline_mode<synchronous>, transform_indices = @transform_7, window_bounds = array<i64: 128, 1>}, {transform_indices = @transform_8, window_bounds = array<i64: 1, 128, 192>}]} {
    %c0 = arith.constant 0 : index
    %c0_0 = arith.constant 0 : index
    %c0_1 = arith.constant 0 : index
    %0 = vector.load %arg1[%c0, %c0_0, %c0_1] : memref<1x4x192xbf16, #tpu.memory_space<vmem>>, vector<1x4x192xbf16>
    %1 = vector.shape_cast %0 : vector<1x4x192xbf16> to vector<4x192xbf16>
    %c0_2 = arith.constant 0 : index
    %c0_3 = arith.constant 0 : index
    %2 = vector.load %arg3[%c0_2, %c0_3] : memref<64x4xbf16, #tpu.memory_space<vmem>>, vector<64x4xbf16>
    %cst = arith.constant dense<0.000000e+00> : vector<64x192xf32>
    %3 = tpu.matmul %2, %1, %cst {dimension_numbers = #tpu.dot_dimension_numbers<[1], [0], [0], [1], [0, 0, 1, 1], [], []>} : vector<64x4xbf16>, vector<4x192xbf16>, vector<64x192xf32> -> vector<64x192xf32>
    %c0_4 = arith.constant 0 : index
    %c0_5 = arith.constant 0 : index
    %4 = vector.load %arg4[%c0_4, %c0_5] : memref<64x1xf32, #tpu.memory_space<vmem>>, vector<64x1xf32>
    %5 = vector.broadcast %4 : vector<64x1xf32> to vector<64x192xf32>
    %6 = arith.addf %3, %5 : vector<64x192xf32>
    %7 = vector.extract_strided_slice %6 {offsets = [0, 0], sizes = [32, 192], strides = [1, 1]} : vector<64x192xf32> to vector<32x192xf32>
    %8 = vector.extract_strided_slice %6 {offsets = [32, 0], sizes = [32, 192], strides = [1, 1]} : vector<64x192xf32> to vector<32x192xf32>
    %9 = arith.truncf %7 : vector<32x192xf32> to vector<32x192xbf16>
    %c0_6 = arith.constant 0 : index
    %c0_7 = arith.constant 0 : index
    %10 = vector.load %arg2[%c0_6, %c0_7] : memref<192x192xbf16, #tpu.memory_space<vmem>>, vector<192x192xbf16>
    %cst_8 = arith.constant dense<0.000000e+00> : vector<32x192xf32>
    %11 = tpu.matmul %9, %10, %cst_8 {dimension_numbers = #tpu.dot_dimension_numbers<[1], [0], [0], [1], [0, 0, 1, 1], [], []>} : vector<32x192xbf16>, vector<192x192xbf16>, vector<32x192xf32> -> vector<32x192xf32>
    %c0_9 = arith.constant 0 : index
    %c0_10 = arith.constant 0 : index
    %12 = vector.load %arg5[%c0_9, %c0_10] : memref<32x32xbf16, #tpu.memory_space<vmem>>, vector<32x32xbf16>
    %13 = arith.truncf %11 : vector<32x192xf32> to vector<32x192xbf16>
    %cst_11 = arith.constant dense<0.000000e+00> : vector<32x192xf32>
    %14 = tpu.matmul %12, %13, %cst_11 {dimension_numbers = #tpu.dot_dimension_numbers<[1], [0], [0], [1], [0, 0, 1, 1], [], []>} : vector<32x32xbf16>, vector<32x192xbf16>, vector<32x192xf32> -> vector<32x192xf32>
    %cst_12 = arith.constant 0.000000e+00 : f32
    %15 = vector.broadcast %cst_12 : f32 to vector<32x192xf32>
    %16 = arith.maximumf %14, %15 : vector<32x192xf32>
    %17 = arith.addf %16, %8 : vector<32x192xf32>
    %cst_13 = arith.constant 0.000000e+00 : f32
    %18 = vector.broadcast %cst_13 : f32 to vector<32x192xf32>
    %19 = arith.maximumf %17, %18 : vector<32x192xf32>
    %c0_14 = arith.constant 0 : index
    %c0_15 = arith.constant 0 : index
    %20 = vector.load %arg6[%c0_14, %c0_15] : memref<32x32xbf16, #tpu.memory_space<vmem>>, vector<32x32xbf16>
    %21 = arith.truncf %19 : vector<32x192xf32> to vector<32x192xbf16>
    %cst_16 = arith.constant dense<0.000000e+00> : vector<32x192xf32>
    %22 = tpu.matmul %20, %21, %cst_16 {dimension_numbers = #tpu.dot_dimension_numbers<[1], [0], [0], [1], [0, 0, 1, 1], [], []>} : vector<32x32xbf16>, vector<32x192xbf16>, vector<32x192xf32> -> vector<32x192xf32>
    %cst_17 = arith.constant 0.000000e+00 : f32
    %23 = vector.broadcast %cst_17 : f32 to vector<32x192xf32>
    %24 = arith.maximumf %22, %23 : vector<32x192xf32>
    %c0_18 = arith.constant 0 : index
    %c0_19 = arith.constant 0 : index
    %25 = vector.load %arg7[%c0_18, %c0_19] : memref<128x32xbf16, #tpu.memory_space<vmem>>, vector<128x32xbf16>
    %26 = arith.truncf %24 : vector<32x192xf32> to vector<32x192xbf16>
    %cst_20 = arith.constant dense<0.000000e+00> : vector<128x192xf32>
    %27 = tpu.matmul %25, %26, %cst_20 {dimension_numbers = #tpu.dot_dimension_numbers<[1], [0], [0], [1], [0, 0, 1, 1], [], []>} : vector<128x32xbf16>, vector<32x192xbf16>, vector<128x192xf32> -> vector<128x192xf32>
    %c0_21 = arith.constant 0 : index
    %c0_22 = arith.constant 0 : index
    %28 = vector.load %arg8[%c0_21, %c0_22] : memref<128x1xf32, #tpu.memory_space<vmem>>, vector<128x1xf32>
    %29 = vector.broadcast %28 : vector<128x1xf32> to vector<128x192xf32>
    %30 = arith.addf %27, %29 : vector<128x192xf32>
    %c0_23 = arith.constant 0 : index
    %c0_24 = arith.constant 0 : index
    %c0_25 = arith.constant 0 : index
    %31 = vector.load %arg9[%c0_23, %c0_24, %c0_25] : memref<1x128x192xf32, #tpu.memory_space<vmem>>, vector<1x128x192xf32>
    %32 = vector.shape_cast %31 : vector<1x128x192xf32> to vector<128x192xf32>
    %33 = vector.shape_cast %30 : vector<128x192xf32> to vector<1x128x192xf32>
    tpu.vector_store %arg9[%c0_23, %c0_24, %c0_25], %33 {strides = array<i32>} : memref<1x128x192xf32, #tpu.memory_space<vmem>>, vector<1x128x192xf32>,
    return
  }
  func.func @transform_0(%arg0: i32) -> (i32, i32, i32) {
    %c0_i32 = arith.constant 0 : i32
    %c0_i32_0 = arith.constant 0 : i32
    %c0_i32_1 = arith.constant 0 : i32
    return %arg0, %c0_i32, %c0_i32_0 : i32, i32, i32
  }
  func.func @transform_1(%arg0: i32) -> (i32, i32) {
    %c0_i32 = arith.constant 0 : i32
    %c0_i32_0 = arith.constant 0 : i32
    %c0_i32_1 = arith.constant 0 : i32
    return %c0_i32, %c0_i32_0 : i32, i32
  }
  func.func @transform_2(%arg0: i32) -> (i32, i32) {
    %c0_i32 = arith.constant 0 : i32
    %c0_i32_0 = arith.constant 0 : i32
    %c0_i32_1 = arith.constant 0 : i32
    return %c0_i32, %c0_i32_0 : i32, i32
  }
  func.func @transform_3(%arg0: i32) -> (i32, i32) {
    %c0_i32 = arith.constant 0 : i32
    %c0_i32_0 = arith.constant 0 : i32
    %c0_i32_1 = arith.constant 0 : i32
    return %c0_i32, %c0_i32_0 : i32, i32
  }
  func.func @transform_4(%arg0: i32) -> (i32, i32) {
    %c0_i32 = arith.constant 0 : i32
    %c0_i32_0 = arith.constant 0 : i32
    %c0_i32_1 = arith.constant 0 : i32
    return %c0_i32, %c0_i32_0 : i32, i32
  }
  func.func @transform_5(%arg0: i32) -> (i32, i32) {
    %c0_i32 = arith.constant 0 : i32
    %c0_i32_0 = arith.constant 0 : i32
    %c0_i32_1 = arith.constant 0 : i32
    return %c0_i32, %c0_i32_0 : i32, i32
  }
  func.func @transform_6(%arg0: i32) -> (i32, i32) {
    %c0_i32 = arith.constant 0 : i32
    %c0_i32_0 = arith.constant 0 : i32
    %c0_i32_1 = arith.constant 0 : i32
    return %c0_i32, %c0_i32_0 : i32, i32
  }
  func.func @transform_7(%arg0: i32) -> (i32, i32) {
    %c0_i32 = arith.constant 0 : i32
    %c0_i32_0 = arith.constant 0 : i32
    %c0_i32_1 = arith.constant 0 : i32
    return %c0_i32, %c0_i32_0 : i32, i32
  }
  func.func @transform_8(%arg0: i32) -> (i32, i32, i32) {
    %c0_i32 = arith.constant 0 : i32
    %c0_i32_0 = arith.constant 0 : i32
    %c0_i32_1 = arith.constant 0 : i32
    return %arg0, %c0_i32, %c0_i32_0 : i32, i32, i32
  }
}

</mosaic_0001>

<llo_original>
// kernel: sandwich_gnn_forward.1
$region0: #{sandwich_gnn_forward.1}
  #allocation0 [shape = 'u32[]', space=smem, size = 0x4, offset = 0x4, fixed_abs, tag = 'smem constant byte address 0x4 - core index']
  #allocation1 [shape = 'u32[144,128]{1,0:T(1,128)}', space=vmem, size = 0x12000, scoped, tag = 'internal scratch']
  %s0 = inlined_call_operand.vmem [shape: bf16[2,4,192], index: 0, kind: input, shape index: {}]
  %s1 = inlined_call_operand.vmem [shape: bf16[192,192], index: 1, kind: input, shape index: {}]
  %s2 = inlined_call_operand.vmem [shape: bf16[64,4], index: 2, kind: input, shape index: {}]
  %s3 = inlined_call_operand.vmem [shape: f32[64,1], index: 3, kind: input, shape index: {}]
  %s4 = inlined_call_operand.vmem [shape: bf16[32,32], index: 4, kind: input, shape index: {}]
  %s5 = inlined_call_operand.vmem [shape: bf16[32,32], index: 5, kind: input, shape index: {}]
  %s6 = inlined_call_operand.vmem [shape: bf16[128,32], index: 6, kind: input, shape index: {}]
  %s7 = inlined_call_operand.vmem [shape: f32[128,1], index: 7, kind: input, shape index: {}]
  %s8 = inlined_call_operand.vmem [shape: f32[2,128,192], index: 8, kind: output, shape index: {}]
  %s9 = sld [smem:[#allocation0]]
  $region65: #{sandwich_gnn_forward.1} parent=0
    _
  %s11 = ssub.s32 1, %s9
  %s12 = scalar_select 0, %s11, %s9
  loop: start=0, step=1, limit=4
  $region2: #{sandwich_gnn_forward.1} parent=0 // loop_pre_header
    _
  $region3: #{sandwich_gnn_forward.1} parent=0 // loop_header
    %s14 = sphi 0, %s18
    %p15 = scmp.ge.s32.totalorder %s14, 4
    %s24 = sphi 0, %s26
    %s27 = sphi 0, %s24
    %s28 = sphi 0, %s27
    %s44 = sphi 0, %s28
    %s48 = sphi 0, %s48
    %s50 = sphi 0, %s48
    %s51 = sphi 0, %s50
    %s65 = sphi 0, %s51
    %s69 = sphi 0, %s69
    %s71 = sphi 0, %s69
    %s72 = sphi 0, %s71
    %s86 = sphi 0, %s72
    %s90 = sphi 0, %s90
    %s92 = sphi 0, %s90
    %s93 = sphi 0, %s92
    %s107 = sphi 0, %s93
    %s111 = sphi 0, %s111
    %s113 = sphi 0, %s111
    %s114 = sphi 0, %s113
    %s128 = sphi 0, %s114
    %s132 = sphi 0, %s132
    %s134 = sphi 0, %s132
    %s135 = sphi 0, %s134
    %s149 = sphi 0, %s135
    %s153 = sphi 0, %s153
    %s155 = sphi 0, %s153
    %s156 = sphi 0, %s155
    %s170 = sphi 0, %s156
    %s174 = sphi 0, %s174
    %s176 = sphi 0, %s174
    %s177 = sphi 0, %s176
    %s191 = sphi 0, %s177
    %s197 = sphi 0, %s199
    %s200 = sphi 0, %s197
    %s201 = sphi 0, %s200
    %s217 = sphi 0, %s201
  $region4: #{sandwich_gnn_forward.1} parent=0 // loop_header_branch
    %17 = sbr.rel (%p15) target = $region8
  $region5: #{sandwich_gnn_forward.1} parent=0 // loop_body
    %s19 = ssub.s32 %s14, 1
    %s20 = ssub.s32 %s14, 2
    %s21 = sadd.s32 %s14, 1
    %s22 = ssub.s32 %s14, %s21
    %p23 = scmp.eq.s32.totalorder %s22, 0
    %s25 = sadd.s32 %s24, 1
    %s26 = scalar_select %p23, %s24, %s25
    %p29 = pneg %p23
    %p30 = scmp.eq.s32.totalorder %s14, 1
    %p31 = por %p29, %p30
    %p32 = scmp.ne.s32.totalorder %s24, %s27
    %p33 = scmp.eq.s32.totalorder %s14, 0
    %p34 = por %p32, %p33
    %p35 = scmp.ne.s32.totalorder %s24, %s27
    %p36 = scmp.eq.s32.totalorder %s19, 1
    %p37 = por %p35, %p36
    %p38 = scmp.ne.s32.totalorder %s27, %s28
    %p39 = scmp.eq.s32.totalorder %s19, 0
    %p40 = por %p38, %p39
    %p41 = scmp.ne.s32.totalorder %s27, %s28
    %p42 = scmp.eq.s32.totalorder %s20, 1
    %p43 = por %p41, %p42
    %p45 = scmp.ne.s32.totalorder %s28, %s44
    %p46 = scmp.eq.s32.totalorder %s20, 0
    %p47 = por %p45, %p46
    %s49 = sadd.s32 %s48, 1
    %p52 = scmp.eq.s32.totalorder %s14, 1
    %p53 = scmp.ne.s32.totalorder %s48, %s50
    %p54 = scmp.eq.s32.totalorder %s14, 0
    %p55 = por %p53, %p54
    %p56 = scmp.ne.s32.totalorder %s48, %s50
    %p57 = scmp.eq.s32.totalorder %s19, 1
    %p58 = por %p56, %p57
    %p59 = scmp.ne.s32.totalorder %s50, %s51
    %p60 = scmp.eq.s32.totalorder %s19, 0
    %p61 = por %p59, %p60
    %p62 = scmp.ne.s32.totalorder %s50, %s51
    %p63 = scmp.eq.s32.totalorder %s20, 1
    %p64 = por %p62, %p63
    %p66 = scmp.ne.s32.totalorder %s51, %s65
    %p67 = scmp.eq.s32.totalorder %s20, 0
    %p68 = por %p66, %p67
    %s70 = sadd.s32 %s69, 1
    %p73 = scmp.eq.s32.totalorder %s14, 1
    %p74 = scmp.ne.s32.totalorder %s69, %s71
    %p75 = scmp.eq.s32.totalorder %s14, 0
    %p76 = por %p74, %p75
    %p77 = scmp.ne.s32.totalorder %s69, %s71
    %p78 = scmp.eq.s32.totalorder %s19, 1
    %p79 = por %p77, %p78
    %p80 = scmp.ne.s32.totalorder %s71, %s72
    %p81 = scmp.eq.s32.totalorder %s19, 0
    %p82 = por %p80, %p81
    %p83 = scmp.ne.s32.totalorder %s71, %s72
    %p84 = scmp.eq.s32.totalorder %s20, 1
    %p85 = por %p83, %p84
    %p87 = scmp.ne.s32.totalorder %s72, %s86
    %p88 = scmp.eq.s32.totalorder %s20, 0
    %p89 = por %p87, %p88
    %s91 = sadd.s32 %s90, 1
    %p94 = scmp.eq.s32.totalorder %s14, 1
    %p95 = scmp.ne.s32.totalorder %s90, %s92
    %p96 = scmp.eq.s32.totalorder %s14, 0
    %p97 = por %p95, %p96
    %p98 = scmp.ne.s32.totalorder %s90, %s92
    %p99 = scmp.eq.s32.totalorder %s19, 1
    %p100 = por %p98, %p99
    %p101 = scmp.ne.s32.totalorder %s92, %s93
    %p102 = scmp.eq.s32.totalorder %s19, 0
    %p103 = por %p101, %p102
    %p104 = scmp.ne.s32.totalorder %s92, %s93
    %p105 = scmp.eq.s32.totalorder %s20, 1
    %p106 = por %p104, %p105
    %p108 = scmp.ne.s32.totalorder %s93, %s107
    %p109 = scmp.eq.s32.totalorder %s20, 0
    %p110 = por %p108, %p109
    %s112 = sadd.s32 %s111, 1
    %p115 = scmp.eq.s32.totalorder %s14, 1
    %p116 = scmp.ne.s32.totalorder %s111, %s113
    %p117 = scmp.eq.s32.totalorder %s14, 0
    %p118 = por %p116, %p117
    %p119 = scmp.ne.s32.totalorder %s111, %s113
    %p120 = scmp.eq.s32.totalorder %s19, 1
    %p121 = por %p119, %p120
    %p122 = scmp.ne.s32.totalorder %s113, %s114
    %p123 = scmp.eq.s32.totalorder %s19, 0
    %p124 = por %p122, %p123
    %p125 = scmp.ne.s32.totalorder %s113, %s114
    %p126 = scmp.eq.s32.totalorder %s20, 1
    %p127 = por %p125, %p126
    %p129 = scmp.ne.s32.totalorder %s114, %s128
    %p130 = scmp.eq.s32.totalorder %s20, 0
    %p131 = por %p129, %p130
    %s133 = sadd.s32 %s132, 1
    %p136 = scmp.eq.s32.totalorder %s14, 1
    %p137 = scmp.ne.s32.totalorder %s132, %s134
    %p138 = scmp.eq.s32.totalorder %s14, 0
    %p139 = por %p137, %p138
    %p140 = scmp.ne.s32.totalorder %s132, %s134
    %p141 = scmp.eq.s32.totalorder %s19, 1
    %p142 = por %p140, %p141
    %p143 = scmp.ne.s32.totalorder %s134, %s135
    %p144 = scmp.eq.s32.totalorder %s19, 0
    %p145 = por %p143, %p144
    %p146 = scmp.ne.s32.totalorder %s134, %s135
    %p147 = scmp.eq.s32.totalorder %s20, 1
    %p148 = por %p146, %p147
    %p150 = scmp.ne.s32.totalorder %s135, %s149
    %p151 = scmp.eq.s32.totalorder %s20, 0
    %p152 = por %p150, %p151
    %s154 = sadd.s32 %s153, 1
    %p157 = scmp.eq.s32.totalorder %s14, 1
    %p158 = scmp.ne.s32.totalorder %s153, %s155
    %p159 = scmp.eq.s32.totalorder %s14, 0
    %p160 = por %p158, %p159
    %p161 = scmp.ne.s32.totalorder %s153, %s155
    %p162 = scmp.eq.s32.totalorder %s19, 1
    %p163 = por %p161, %p162
    %p164 = scmp.ne.s32.totalorder %s155, %s156
    %p165 = scmp.eq.s32.totalorder %s19, 0
    %p166 = por %p164, %p165
    %p167 = scmp.ne.s32.totalorder %s155, %s156
    %p168 = scmp.eq.s32.totalorder %s20, 1
    %p169 = por %p167, %p168
    %p171 = scmp.ne.s32.totalorder %s156, %s170
    %p172 = scmp.eq.s32.totalorder %s20, 0
    %p173 = por %p171, %p172
    %s175 = sadd.s32 %s174, 1
    %p178 = scmp.eq.s32.totalorder %s14, 1
    %p179 = scmp.ne.s32.totalorder %s174, %s176
    %p180 = scmp.eq.s32.totalorder %s14, 0
    %p181 = por %p179, %p180
    %p182 = scmp.ne.s32.totalorder %s174, %s176
    %p183 = scmp.eq.s32.totalorder %s19, 1
    %p184 = por %p182, %p183
    %p185 = scmp.ne.s32.totalorder %s176, %s177
    %p186 = scmp.eq.s32.totalorder %s19, 0
    %p187 = por %p185, %p186
    %p188 = scmp.ne.s32.totalorder %s176, %s177
    %p189 = scmp.eq.s32.totalorder %s20, 1
    %p190 = por %p188, %p189
    %p192 = scmp.ne.s32.totalorder %s177, %s191
    %p193 = scmp.eq.s32.totalorder %s20, 0
    %p194 = por %p192, %p193
    %s195 = ssub.s32 %s14, %s21
    %p196 = scmp.eq.s32.totalorder %s195, 0
    %s198 = sadd.s32 %s197, 1
    %s199 = scalar_select %p196, %s197, %s198
    %p202 = pneg %p196
    %p203 = scmp.eq.s32.totalorder %s14, 1
    %p204 = por %p202, %p203
    %p205 = scmp.ne.s32.totalorder %s197, %s200
    %p206 = scmp.eq.s32.totalorder %s14, 0
    %p207 = por %p205, %p206
    %p208 = scmp.ne.s32.totalorder %s197, %s200
    %p209 = scmp.eq.s32.totalorder %s19, 1
    %p210 = por %p208, %p209
    %p211 = scmp.ne.s32.totalorder %s200, %s201
    %p212 = scmp.eq.s32.totalorder %s19, 0
    %p213 = por %p211, %p212
    %p214 = scmp.ne.s32.totalorder %s200, %s201
    %p215 = scmp.eq.s32.totalorder %s20, 1
    %p216 = por %p214, %p215
    %p218 = scmp.ne.s32.totalorder %s201, %s217
    %p219 = scmp.eq.s32.totalorder %s20, 0
    %p220 = por %p218, %p219
    %p221 = scmp.le.s32.totalorder 1, %s14
    %p222 = scmp.lt.s32.totalorder %s14, 3
    %p223 = pnand %p221, %p222
    %p224 = pneg %p223
    // Predicated region
    $region9: #{sandwich_gnn_forward.1} parent=5 // pred_check
      _
    $region10: #{sandwich_gnn_forward.1} parent=5 // pred_check_branch
      %226 = sbr.rel (%p223) target = $region12
    $region11: #{sandwich_gnn_forward.1} parent=5 // pred_region
      %s227 = ssub.s32 %s14, 1
      // Predicated region
      $region13: #{sandwich_gnn_forward.1} parent=11 // pred_check
        %p228 = pneg %p61
      $region14: #{sandwich_gnn_forward.1} parent=11 // pred_check_branch
        %230 = sbr.rel (%p228) target = $region16
      $region15: #{sandwich_gnn_forward.1} parent=11 // pred_region
        _
      $region16: #{sandwich_gnn_forward.1} parent=11 // pred_fallthru
        _
      // Predicated region
      $region17: #{sandwich_gnn_forward.1} parent=11 // pred_check
        %p231 = pneg %p82
      $region18: #{sandwich_gnn_forward.1} parent=11 // pred_check_branch
        %233 = sbr.rel (%p231) target = $region20
      $region19: #{sandwich_gnn_forward.1} parent=11 // pred_region
        _
      $region20: #{sandwich_gnn_forward.1} parent=11 // pred_fallthru
        _
      // Predicated region
      $region21: #{sandwich_gnn_forward.1} parent=11 // pred_check
        %p234 = pneg %p103
      $region22: #{sandwich_gnn_forward.1} parent=11 // pred_check_branch
        %236 = sbr.rel (%p234) target = $region24
      $region23: #{sandwich_gnn_forward.1} parent=11 // pred_region
        _
      $region24: #{sandwich_gnn_forward.1} parent=11 // pred_fallthru
        _
      // Predicated region
      $region25: #{sandwich_gnn_forward.1} parent=11 // pred_check
        %p237 = pneg %p124
      $region26: #{sandwich_gnn_forward.1} parent=11 // pred_check_branch
        %239 = sbr.rel (%p237) target = $region28
      $region27: #{sandwich_gnn_forward.1} parent=11 // pred_region
        _
      $region28: #{sandwich_gnn_forward.1} parent=11 // pred_fallthru
        _
      // Predicated region
      $region29: #{sandwich_gnn_forward.1} parent=11 // pred_check
        %p240 = pneg %p145
      $region30: #{sandwich_gnn_forward.1} parent=11 // pred_check_branch
        %242 = sbr.rel (%p240) target = $region32
      $region31: #{sandwich_gnn_forward.1} parent=11 // pred_region
        _
      $region32: #{sandwich_gnn_forward.1} parent=11 // pred_fallthru
        _
      // Predicated region
      $region33: #{sandwich_gnn_forward.1} parent=11 // pred_check
        %p243 = pneg %p166
      $region34: #{sandwich_gnn_forward.1} parent=11 // pred_check_branch
        %245 = sbr.rel (%p243) target = $region36
      $region35: #{sandwich_gnn_forward.1} parent=11 // pred_region
        _
      $region36: #{sandwich_gnn_forward.1} parent=11 // pred_fallthru
        _
      // Predicated region
      $region37: #{sandwich_gnn_forward.1} parent=11 // pred_check
        %p246 = pneg %p187
      $region38: #{sandwich_gnn_forward.1} parent=11 // pred_check_branch
        %248 = sbr.rel (%p246) target = $region40
      $region39: #{sandwich_gnn_forward.1} parent=11 // pred_region
        _
      $region40: #{sandwich_gnn_forward.1} parent=11 // pred_fallthru
        _
    $region12: #{sandwich_gnn_forward.1} parent=5 // pred_fallthru
      _
    %p249 = scmp.lt.s32.totalorder %s14, 2
    // Predicated region
    $region41: #{sandwich_gnn_forward.1} parent=5 // pred_check
      %p250 = pneg %p249
    $region42: #{sandwich_gnn_forward.1} parent=5 // pred_check_branch
      %252 = sbr.rel (%p250) target = $region44
    $region43: #{sandwich_gnn_forward.1} parent=5 // pred_region
      // Predicated region
      $region45: #{sandwich_gnn_forward.1} parent=43 // pred_check
        %p253 = pneg %p34
      $region46: #{sandwich_gnn_forward.1} parent=43 // pred_check_branch
        %255 = sbr.rel (%p253) target = $region48
      $region47: #{sandwich_gnn_forward.1} parent=43 // pred_region
        %p256 = scmp.lt.s32.totalorder %s14, 1
        %s257 = scalar_select %p256, %s14, 1
        %s258 = smul.addr %s257, 2
        %s259 = smul.addr %s258, 2
        %s260 = scalar_lea.vmem %s0, %s259
      $region48: #{sandwich_gnn_forward.1} parent=43 // pred_fallthru
        _
    $region44: #{sandwich_gnn_forward.1} parent=5 // pred_fallthru
      _
    %p261 = scmp.le.s32.totalorder 1, %s14
    %p262 = scmp.lt.s32.totalorder %s14, 3
    %p263 = pnand %p261, %p262
    %p264 = pneg %p263
    // Predicated region
    $region49: #{sandwich_gnn_forward.1} parent=5 // pred_check
      _
    $region50: #{sandwich_gnn_forward.1} parent=5 // pred_check_branch
      %266 = sbr.rel (%p263) target = $region52
    $region51: #{sandwich_gnn_forward.1} parent=5 // pred_region
      %s267 = ssub.s32 %s14, 1
      %p268 = scmp.lt.s32.totalorder %s19, 1
      %s269 = scalar_select %p268, %s19, 1
      %s270 = smul.addr %s269, 2
      %s271 = smul.addr %s270, 2
      %s272 = scalar_lea.vmem %s0, %s271
      %p273 = pneg %p40
      %p274 = pneg %p37
      %p275 = pneg %p61
      %p276 = pneg %p58
      %p277 = pneg %p82
      %p278 = pneg %p79
      %p279 = pneg %p103
      %p280 = pneg %p100
      %p281 = pneg %p124
      %p282 = pneg %p121
      %p283 = pneg %p145
      %p284 = pneg %p142
      %p285 = pneg %p166
      %p286 = pneg %p163
      %p287 = pneg %p187
      %p288 = pneg %p184
      %p289 = pneg %p213
      %p290 = pneg %p210
      %p291 = scmp.lt.s32.totalorder %s19, 1
      %s292 = scalar_select %p291, %s19, 1
      %s293 = smul.addr %s292, 32
      %s294 = smul.addr %s293, 8
      %s295 = scalar_lea.vmem %s8, %s294
      %p296 = scmp.lt.s32.totalorder %s19, 1
      %s297 = scalar_select %p296, %s19, 1
      %s298 = smul.addr %s297, 2
      %s299 = smul.addr %s298, 2
      %s300 = scalar_lea.vmem %s0, %s299
      %p301 = scmp.lt.s32.totalorder %s19, 1
      %s302 = scalar_select %p301, %s19, 1
      %s303 = smul.addr %s302, 32
      %s304 = smul.addr %s303, 8
      %s305 = scalar_lea.vmem %s8, %s304
      %v307 = vld [vmem:[%s300] sm:$0xf]
      %v308 = vld [vmem:[%s2] sm:$0xf]
      %v309 = vld [vmem:[%s2 + $0x4] sm:$0xf]
      %v310 = vld [vmem:[%s2 + $0x8] sm:$0xf]
      %v311 = vld [vmem:[%s2 + $0xc] sm:$0xf]
      %v312 = vld [vmem:[%s2 + $0x10] sm:$0xf]
      %v313 = vld [vmem:[%s2 + $0x14] sm:$0xf]
      %v314 = vld [vmem:[%s2 + $0x18] sm:$0xf]
      %v315 = vld [vmem:[%s2 + $0x1c] sm:$0xf]
      %v316 = vld [vmem:[%s3] sm:$0xff]
      %v317 = vld [vmem:[%s3 + $0x8] sm:$0xff]
      %v318 = vld [vmem:[%s3 + $0x10] sm:$0xff]
      %v319 = vld [vmem:[%s3 + $0x18] sm:$0xff]
      %v320 = vld [vmem:[%s3 + $0x20] sm:$0xff]
      %v321 = vld [vmem:[%s3 + $0x28] sm:$0xff]
      %v322 = vld [vmem:[%s3 + $0x30] sm:$0xff]
      %v323 = vld [vmem:[%s3 + $0x38] sm:$0xff]
      %325 = vset.pattern.permute.xlu0 0
      %326 = vperm.xlu0 %325, %v316
      %v327 = vpop.permute.xlu0 %326
      %330 = vset.pattern.permute.xlu0 0
      %331 = vperm.xlu0 %330, %v317
      %v332 = vpop.permute.xlu0 %331
      %335 = vset.pattern.permute.xlu0 0
      %336 = vperm.xlu0 %335, %v318
      %v337 = vpop.permute.xlu0 %336
      %340 = vset.pattern.permute.xlu0 0
      %341 = vperm.xlu0 %340, %v319
      %v342 = vpop.permute.xlu0 %341
      %345 = vset.pattern.permute.xlu0 0
      %346 = vperm.xlu0 %345, %v320
      %v347 = vpop.permute.xlu0 %346
      %350 = vset.pattern.permute.xlu0 0
      %351 = vperm.xlu0 %350, %v321
      %v352 = vpop.permute.xlu0 %351
      %355 = vset.pattern.permute.xlu0 0
      %356 = vperm.xlu0 %355, %v322
      %v357 = vpop.permute.xlu0 %356
      %360 = vset.pattern.permute.xlu0 0
      %361 = vperm.xlu0 %360, %v323
      %v362 = vpop.permute.xlu0 %361
      %v372 = vunpack.c.l.b16 %v308
      %v373 = vunpack.c.l.b16 %v309
      %v374 = vunpack.c.l.b16 %v310
      %v375 = vunpack.c.l.b16 %v311
      %v376 = vunpack.c.l.b16 %v312
      %v377 = vunpack.c.l.b16 %v313
      %v378 = vunpack.c.l.b16 %v314
      %v379 = vunpack.c.l.b16 %v315
      %v380 = vpack.c.b16 %v373, %v372
      %v381 = vpack.c.b16 %v375, %v374
      %v382 = vpack.c.b16 %v377, %v376
      %v383 = vpack.c.b16 %v379, %v378
      %v386 = vunpack.c.l.s4 1983009808
      %v387 = vunpack.c.0.s8 %v386
      %v388 = vlaneseq
      %v389 = vshrl.u32 %v388, 7
      %v390 = vsub.s32 %v387, %v389
      %v391 = vrot.slane %v307, %v390
      %v392 = vcombine.high %v391, %v391
      %vm393 = vcmask 31744
      %v395 = vsel %vm393, %v380, 0
      %v398 = vsel %vm393, %v381, 0
      %v401 = vsel %vm393, %v382, 0
      %v404 = vsel %vm393, %v383, 0
      %vm406 = vcmask 1041408
      %v408 = vsel %vm406, %v391, 0
      %v411 = vsel %vm406, %v392, 0
      %413 = vmatprep.subr.bf16.mxu0 0
      %414 = vmatpush1.bf16.msra.mxu0 0
      %415 = vmatprep.subr.bf16.mxu0 0
      %416 = vmatpush1.bf16.msra.mxu0 0
      %417 = vmatprep.subr.bf16.mxu0 0
      %418 = vmatpush1.bf16.msra.mxu0 0
      %419 = vmatprep.subr.bf16.mxu0 0
      %420 = vmatpush1.bf16.msra.mxu0 0
      %421 = vmatprep.subr.bf16.mxu0 0
      %422 = vmatpush1.bf16.msra.mxu0 0
      %423 = vmatprep.subr.bf16.mxu0 0
      %424 = vmatpush1.bf16.msra.mxu0 0
      %425 = vmatprep.subr.bf16.mxu0 0
      %426 = vmatpush1.bf16.msra.mxu0 0
      %427 = vmatprep.subr.bf16.mxu0 %v411
      %428 = vmatpush1.bf16.msra.mxu0 %v408
      %429 = vmatprep.subr.bf16.mxu0 0
      %430 = vmatpush2.bf16.msra.mxu0 0
      %431 = vmatprep.subr.bf16.mxu0 0
      %432 = vmatpush2.bf16.msra.mxu0 0
      %433 = vmatprep.subr.bf16.mxu0 0
      %434 = vmatpush2.bf16.msra.mxu0 0
      %435 = vmatprep.subr.bf16.mxu0 0
      %436 = vmatpush2.bf16.msra.mxu0 0
      %437 = vmatprep.subr.bf16.mxu0 0
      %438 = vmatpush2.bf16.msra.mxu0 0
      %439 = vmatprep.subr.bf16.mxu0 0
      %440 = vmatpush2.bf16.msra.mxu0 0
      %441 = vmatprep.subr.bf16.mxu0 0
      %442 = vmatpush2.bf16.msra.mxu0 0
      %443 = vmatprep.subr.bf16.mxu0 0
      %444 = vmatpush2.bf16.msra.mxu0 0
      %445 = vmatprep.mubr.bf16.mxu0 0
      %446 = vmatmul.mubr.bf16.gmra.mxu0 %v395
      %v447 = vpop.f32.mrf.mxu0
      %v448 = vadd.f32 %v327, %v447
      %v449 = vpop.f32.mrf.mxu0
      %v450 = vadd.f32 %v327, %v449
      %v451 = vpop.f32.mrf.mxu0
      %v452 = vadd.f32 %v332, %v451
      %v453 = vpop.f32.mrf.mxu0
      %v454 = vadd.f32 %v332, %v453
      %455 = vmatprep.mubr.bf16.mxu0 0
      %456 = vmatmul.mubr.bf16.gmra.mxu0 %v398
      %v457 = vpop.f32.mrf.mxu0
      %v458 = vadd.f32 %v337, %v457
      %v459 = vpop.f32.mrf.mxu0
      %v460 = vadd.f32 %v337, %v459
      %v461 = vpop.f32.mrf.mxu0
      %v462 = vadd.f32 %v342, %v461
      %v463 = vpop.f32.mrf.mxu0
      %v464 = vadd.f32 %v342, %v463
      %465 = vmatprep.mubr.bf16.mxu0 0
      %466 = vmatmul.mubr.bf16.gmra.mxu0 %v401
      %v467 = vpop.f32.mrf.mxu0
      %v468 = vadd.f32 %v347, %v467
      %v469 = vpop.f32.mrf.mxu0
      %v470 = vadd.f32 %v347, %v469
      %v471 = vpop.f32.mrf.mxu0
      %v472 = vadd.f32 %v352, %v471
      %v473 = vpop.f32.mrf.mxu0
      %v474 = vadd.f32 %v352, %v473
      %475 = vmatprep.mubr.bf16.mxu0 0
      %476 = vmatmul.mubr.bf16.gmra.mxu0 %v404
      %v477 = vpop.f32.mrf.mxu0
      %v478 = vadd.f32 %v357, %v477
      %v479 = vpop.f32.mrf.mxu0
      %v480 = vadd.f32 %v357, %v479
      %v481 = vpop.f32.mrf.mxu0
      %v482 = vadd.f32 %v362, %v481
      %v483 = vpop.f32.mrf.mxu0
      %v484 = vadd.f32 %v362, %v483
      %485 = vdwg.mxu0
      %v486 = vpack.c.bf16 %v452, %v448
      %v487 = vpack.c.bf16 %v454, %v450
      %v488 = vpack.c.bf16 %v462, %v458
      %v489 = vpack.c.bf16 %v464, %v460
      %v490 = vld [vmem:[%s1] sm:$0xff]
      %v491 = vld [vmem:[%s1 + $0x8] sm:$0xff]
      %v492 = vld [vmem:[%s1 + $0x10] sm:$0xff]
      %v493 = vld [vmem:[%s1 + $0x18] sm:$0xff]
      %v494 = vld [vmem:[%s1 + $0x20] sm:$0xff]
      %v495 = vld [vmem:[%s1 + $0x28] sm:$0xff]
      %v496 = vld [vmem:[%s1 + $0x30] sm:$0xff]
      %v497 = vld [vmem:[%s1 + $0x38] sm:$0xff]
      %v498 = vld [vmem:[%s1 + $0x40] sm:$0xff]
      %v499 = vld [vmem:[%s1 + $0x48] sm:$0xff]
      %v500 = vld [vmem:[%s1 + $0x50] sm:$0xff]
      %v501 = vld [vmem:[%s1 + $0x58] sm:$0xff]
      %v502 = vld [vmem:[%s1 + $0x60] sm:$0xff]
      %v503 = vld [vmem:[%s1 + $0x68] sm:$0xff]
      %v504 = vld [vmem:[%s1 + $0x70] sm:$0xff]
      %v505 = vld [vmem:[%s1 + $0x78] sm:$0xff]
      %v506 = vld [vmem:[%s1 + $0x80] sm:$0xff]
      %v507 = vld [vmem:[%s1 + $0x88] sm:$0xff]
      %v508 = vld [vmem:[%s1 + $0x90] sm:$0xff]
      %v509 = vld [vmem:[%s1 + $0x98] sm:$0xff]
      %v510 = vld [vmem:[%s1 + $0xa0] sm:$0xff]
      %v511 = vld [vmem:[%s1 + $0xa8] sm:$0xff]
      %v512 = vld [vmem:[%s1 + $0xb0] sm:$0xff]
      %v513 = vld [vmem:[%s1 + $0xb8] sm:$0xff]
      %v538 = vunpack.c.l.b16 %v490
      %v539 = vunpack.c.h.b16 %v490
      %v540 = vunpack.c.l.b16 %v491
      %v541 = vunpack.c.h.b16 %v491
      %v542 = vunpack.c.l.b16 %v492
      %v543 = vunpack.c.h.b16 %v492
      %v544 = vunpack.c.l.b16 %v493
      %v545 = vunpack.c.h.b16 %v493
      %v546 = vunpack.c.l.b16 %v494
      %v547 = vunpack.c.h.b16 %v494
      %v548 = vunpack.c.l.b16 %v495
      %v549 = vunpack.c.h.b16 %v495
      %v550 = vunpack.c.l.b16 %v496
      %v551 = vunpack.c.h.b16 %v496
      %v552 = vunpack.c.l.b16 %v497
      %v553 = vunpack.c.h.b16 %v497
      %v554 = vunpack.c.l.b16 %v498
      %v555 = vunpack.c.h.b16 %v498
      %v556 = vunpack.c.l.b16 %v499
      %v557 = vunpack.c.h.b16 %v499
      %v558 = vunpack.c.l.b16 %v500
      %v559 = vunpack.c.h.b16 %v500
      %v560 = vunpack.c.l.b16 %v501
      %v561 = vunpack.c.h.b16 %v501
      %v562 = vunpack.c.l.b16 %v502
      %v563 = vunpack.c.h.b16 %v502
      %v564 = vunpack.c.l.b16 %v503
      %v565 = vunpack.c.h.b16 %v503
      %v566 = vunpack.c.l.b16 %v504
      %v567 = vunpack.c.h.b16 %v504
      %v568 = vunpack.c.l.b16 %v505
      %v569 = vunpack.c.h.b16 %v505
      %v570 = vunpack.c.l.b16 %v506
      %v571 = vunpack.c.h.b16 %v506
      %v572 = vunpack.c.l.b16 %v507
      %v573 = vunpack.c.h.b16 %v507
      %v574 = vunpack.c.l.b16 %v508
      %v575 = vunpack.c.h.b16 %v508
      %v576 = vunpack.c.l.b16 %v509
      %v577 = vunpack.c.h.b16 %v509
      %v578 = vunpack.c.l.b16 %v510
      %v579 = vunpack.c.h.b16 %v510
      %v580 = vunpack.c.l.b16 %v511
      %v581 = vunpack.c.h.b16 %v511
      %v582 = vunpack.c.l.b16 %v512
      %v583 = vunpack.c.h.b16 %v512
      %v584 = vunpack.c.l.b16 %v513
      %v585 = vunpack.c.h.b16 %v513
      %v586 = vpack.c.b16 %v540, %v538
      %v587 = vpack.c.b16 %v541, %v539
      %v588 = vpack.c.b16 %v544, %v542
      %v589 = vpack.c.b16 %v545, %v543
      %v590 = vpack.c.b16 %v548, %v546
      %v591 = vpack.c.b16 %v549, %v547
      %v592 = vpack.c.b16 %v552, %v550
      %v593 = vpack.c.b16 %v553, %v551
      %v594 = vpack.c.b16 %v556, %v554
      %v595 = vpack.c.b16 %v557, %v555
      %v596 = vpack.c.b16 %v560, %v558
      %v597 = vpack.c.b16 %v561, %v559
      %v598 = vpack.c.b16 %v564, %v562
      %v599 = vpack.c.b16 %v565, %v563
      %v600 = vpack.c.b16 %v568, %v566
      %v601 = vpack.c.b16 %v569, %v567
      %v602 = vpack.c.b16 %v572, %v570
      %v603 = vpack.c.b16 %v573, %v571
      %v604 = vpack.c.b16 %v576, %v574
      %v605 = vpack.c.b16 %v577, %v575
      %v606 = vpack.c.b16 %v580, %v578
      %v607 = vpack.c.b16 %v581, %v579
      %v608 = vpack.c.b16 %v584, %v582
      %v609 = vpack.c.b16 %v585, %v583
      %vm634 = vcmask 523264
      %v636 = vsel %vm634, %v487, 0
      %v639 = vsel %vm634, %v489, 0
      %641 = vmatprep.subr.bf16.mxu0 %v601
      %642 = vmatpush1.bf16.msra.mxu0 %v600
      %643 = vmatprep.subr.bf16.mxu0 %v599
      %644 = vmatpush1.bf16.msra.mxu0 %v598
      %645 = vmatprep.subr.bf16.mxu0 %v597
      %646 = vmatpush1.bf16.msra.mxu0 %v596
      %647 = vmatprep.subr.bf16.mxu0 %v595
      %648 = vmatpush1.bf16.msra.mxu0 %v594
      %649 = vmatprep.subr.bf16.mxu0 %v593
      %650 = vmatpush1.bf16.msra.mxu0 %v592
      %651 = vmatprep.subr.bf16.mxu0 %v591
      %652 = vmatpush1.bf16.msra.mxu0 %v590
      %653 = vmatprep.subr.bf16.mxu0 %v589
      %654 = vmatpush1.bf16.msra.mxu0 %v588
      %655 = vmatprep.subr.bf16.mxu0 %v587
      %656 = vmatpush1.bf16.msra.mxu0 %v586
      %657 = vmatprep.subr.bf16.mxu0 0
      %658 = vmatpush2.bf16.msra.mxu0 0
      %659 = vmatprep.subr.bf16.mxu0 0
      %660 = vmatpush2.bf16.msra.mxu0 0
      %661 = vmatprep.subr.bf16.mxu0 0
      %662 = vmatpush2.bf16.msra.mxu0 0
      %663 = vmatprep.subr.bf16.mxu0 0
      %664 = vmatpush2.bf16.msra.mxu0 0
      %665 = vmatprep.subr.bf16.mxu0 %v609
      %666 = vmatpush2.bf16.msra.mxu0 %v608
      %667 = vmatprep.subr.bf16.mxu0 %v607
      %668 = vmatpush2.bf16.msra.mxu0 %v606
      %669 = vmatprep.subr.bf16.mxu0 %v605
      %670 = vmatpush2.bf16.msra.mxu0 %v604
      %671 = vmatprep.subr.bf16.mxu0 %v603
      %672 = vmatpush2.bf16.msra.mxu0 %v602
      %673 = vmatprep.mubr.bf16.mxu0 %v636
      %674 = vmatmul.mubr.bf16.gmra.mxu0 %v486
      %v675 = vpop.f32.mrf.mxu0
      %v676 = vadd.f32 0.0, %v675
      %v677 = vpop.f32.mrf.mxu0
      %v678 = vadd.f32 0.0, %v677
      %v679 = vpop.f32.mrf.mxu0
      %v680 = vadd.f32 0.0, %v679
      %v681 = vpop.f32.mrf.mxu0
      %v682 = vadd.f32 0.0, %v681
      %683 = vmatprep.mubr.bf16.mxu0 %v639
      %684 = vmatmul.mubr.bf16.gmra.mxu0 %v488
      %v685 = vpop.f32.mrf.mxu0
      %v686 = vadd.f32 0.0, %v685
      %v687 = vpop.f32.mrf.mxu0
      %v688 = vadd.f32 0.0, %v687
      %v689 = vpop.f32.mrf.mxu0
      %v690 = vadd.f32 0.0, %v689
      %v691 = vpop.f32.mrf.mxu0
      %v692 = vadd.f32 0.0, %v691
      %693 = vdwg.mxu0
      %v694 = vld [vmem:[%s4] sm:$0xf]
      %v695 = vld [vmem:[%s4 + $0x4] sm:$0xf]
      %v696 = vld [vmem:[%s4 + $0x8] sm:$0xf]
      %v697 = vld [vmem:[%s4 + $0xc] sm:$0xf]
      %v698 = vpack.c.bf16 %v680, %v676
      %v699 = vpack.c.bf16 %v682, %v678
      %v700 = vpack.c.bf16 %v690, %v686
      %v701 = vpack.c.bf16 %v692, %v688
      %v706 = vunpack.c.l.b16 %v694
      %v707 = vunpack.c.l.b16 %v695
      %v708 = vunpack.c.l.b16 %v696
      %v709 = vunpack.c.l.b16 %v697
      %v710 = vpack.c.b16 %v707, %v706
      %v711 = vpack.c.b16 %v709, %v708
      %vm712 = vcmask 261120
      %v714 = vsel %vm712, %v710, 0
      %v717 = vsel %vm712, %v711, 0
      %719 = vmatprep.subr.bf16.mxu0 0
      %720 = vmatpush1.bf16.msra.mxu0 0
      %721 = vmatprep.subr.bf16.mxu0 0
      %722 = vmatpush1.bf16.msra.mxu0 0
      %723 = vmatprep.subr.bf16.mxu0 0
      %724 = vmatpush1.bf16.msra.mxu0 0
      %725 = vmatprep.subr.bf16.mxu0 0
      %726 = vmatpush1.bf16.msra.mxu0 0
      %727 = vmatprep.subr.bf16.mxu0 0
      %728 = vmatpush1.bf16.msra.mxu0 0
      %729 = vmatprep.subr.bf16.mxu0 0
      %730 = vmatpush1.bf16.msra.mxu0 0
      %731 = vmatprep.subr.bf16.mxu0 %v701
      %732 = vmatpush1.bf16.msra.mxu0 %v700
      %733 = vmatprep.subr.bf16.mxu0 %v699
      %734 = vmatpush1.bf16.msra.mxu0 %v698
      %735 = vmatprep.subr.bf16.mxu0 0
      %736 = vmatpush2.bf16.msra.mxu0 0
      %737 = vmatprep.subr.bf16.mxu0 0
      %738 = vmatpush2.bf16.msra.mxu0 0
      %739 = vmatprep.subr.bf16.mxu0 0
      %740 = vmatpush2.bf16.msra.mxu0 0
      %741 = vmatprep.subr.bf16.mxu0 0
      %742 = vmatpush2.bf16.msra.mxu0 0
      %743 = vmatprep.subr.bf16.mxu0 0
      %744 = vmatpush2.bf16.msra.mxu0 0
      %745 = vmatprep.subr.bf16.mxu0 0
      %746 = vmatpush2.bf16.msra.mxu0 0
      %747 = vmatprep.subr.bf16.mxu0 0
      %748 = vmatpush2.bf16.msra.mxu0 0
      %749 = vmatprep.subr.bf16.mxu0 0
      %750 = vmatpush2.bf16.msra.mxu0 0
      %751 = vmatprep.mubr.bf16.mxu0 0
      %752 = vmatmul.mubr.bf16.gmra.mxu0 %v714
      %v753 = vpop.f32.mrf.mxu0
      %v754 = vadd.f32 0.0, %v753
      %v755 = vpop.f32.mrf.mxu0
      %v756 = vadd.f32 0.0, %v755
      %v757 = vpop.f32.mrf.mxu0
      %v758 = vadd.f32 0.0, %v757
      %v759 = vpop.f32.mrf.mxu0
      %v760 = vadd.f32 0.0, %v759
      %761 = vmatprep.mubr.bf16.mxu0 0
      %762 = vmatmul.mubr.bf16.gmra.mxu0 %v717
      %v763 = vpop.f32.mrf.mxu0
      %v764 = vadd.f32 0.0, %v763
      %v765 = vpop.f32.mrf.mxu0
      %v766 = vadd.f32 0.0, %v765
      %v767 = vpop.f32.mrf.mxu0
      %v768 = vadd.f32 0.0, %v767
      %v769 = vpop.f32.mrf.mxu0
      %v770 = vadd.f32 0.0, %v769
      %771 = vdwg.mxu0
      %v772 = vmax.f32 %v754, 0.0
      %v773 = vmax.f32 %v756, 0.0
      %v774 = vmax.f32 %v758, 0.0
      %v775 = vmax.f32 %v760, 0.0
      %v776 = vmax.f32 %v764, 0.0
      %v777 = vmax.f32 %v766, 0.0
      %v778 = vmax.f32 %v768, 0.0
      %v779 = vmax.f32 %v770, 0.0
      %v780 = vadd.f32 %v772, %v468
      %v781 = vadd.f32 %v773, %v470
      %v782 = vadd.f32 %v774, %v472
      %v783 = vadd.f32 %v775, %v474
      %v784 = vadd.f32 %v776, %v478
      %v785 = vadd.f32 %v777, %v480
      %v786 = vadd.f32 %v778, %v482
      %v787 = vadd.f32 %v779, %v484
      %v788 = vmax.f32 %v780, 0.0
      %v789 = vmax.f32 %v781, 0.0
      %v790 = vmax.f32 %v782, 0.0
      %v791 = vmax.f32 %v783, 0.0
      %v792 = vmax.f32 %v784, 0.0
      %v793 = vmax.f32 %v785, 0.0
      %v794 = vmax.f32 %v786, 0.0
      %v795 = vmax.f32 %v787, 0.0
      %v796 = vld [vmem:[%s5] sm:$0xf]
      %v797 = vld [vmem:[%s5 + $0x4] sm:$0xf]
      %v798 = vld [vmem:[%s5 + $0x8] sm:$0xf]
      %v799 = vld [vmem:[%s5 + $0xc] sm:$0xf]
      %v800 = vpack.c.bf16 %v790, %v788
      %v801 = vpack.c.bf16 %v791, %v789
      %v802 = vpack.c.bf16 %v794, %v792
      %v803 = vpack.c.bf16 %v795, %v793
      %v808 = vunpack.c.l.b16 %v796
      %v809 = vunpack.c.l.b16 %v797
      %v810 = vunpack.c.l.b16 %v798
      %v811 = vunpack.c.l.b16 %v799
      %v812 = vpack.c.b16 %v809, %v808
      %v813 = vpack.c.b16 %v811, %v810
      %v815 = vsel %vm712, %v812, 0
      %v818 = vsel %vm712, %v813, 0
      %820 = vmatprep.subr.bf16.mxu0 0
      %821 = vmatpush1.bf16.msra.mxu0 0
      %822 = vmatprep.subr.bf16.mxu0 0
      %823 = vmatpush1.bf16.msra.mxu0 0
      %824 = vmatprep.subr.bf16.mxu0 0
      %825 = vmatpush1.bf16.msra.mxu0 0
      %826 = vmatprep.subr.bf16.mxu0 0
      %827 = vmatpush1.bf16.msra.mxu0 0
      %828 = vmatprep.subr.bf16.mxu0 0
      %829 = vmatpush1.bf16.msra.mxu0 0
      %830 = vmatprep.subr.bf16.mxu0 0
      %831 = vmatpush1.bf16.msra.mxu0 0
      %832 = vmatprep.subr.bf16.mxu0 %v803
      %833 = vmatpush1.bf16.msra.mxu0 %v802
      %834 = vmatprep.subr.bf16.mxu0 %v801
      %835 = vmatpush1.bf16.msra.mxu0 %v800
      %836 = vmatprep.subr.bf16.mxu0 0
      %837 = vmatpush2.bf16.msra.mxu0 0
      %838 = vmatprep.subr.bf16.mxu0 0
      %839 = vmatpush2.bf16.msra.mxu0 0
      %840 = vmatprep.subr.bf16.mxu0 0
      %841 = vmatpush2.bf16.msra.mxu0 0
      %842 = vmatprep.subr.bf16.mxu0 0
      %843 = vmatpush2.bf16.msra.mxu0 0
      %844 = vmatprep.subr.bf16.mxu0 0
      %845 = vmatpush2.bf16.msra.mxu0 0
      %846 = vmatprep.subr.bf16.mxu0 0
      %847 = vmatpush2.bf16.msra.mxu0 0
      %848 = vmatprep.subr.bf16.mxu0 0
      %849 = vmatpush2.bf16.msra.mxu0 0
      %850 = vmatprep.subr.bf16.mxu0 0
      %851 = vmatpush2.bf16.msra.mxu0 0
      %852 = vmatprep.mubr.bf16.mxu0 0
      %853 = vmatmul.mubr.bf16.gmra.mxu0 %v815
      %v854 = vpop.f32.mrf.mxu0
      %v855 = vadd.f32 0.0, %v854
      %v856 = vpop.f32.mrf.mxu0
      %v857 = vadd.f32 0.0, %v856
      %v858 = vpop.f32.mrf.mxu0
      %v859 = vadd.f32 0.0, %v858
      %v860 = vpop.f32.mrf.mxu0
      %v861 = vadd.f32 0.0, %v860
      %862 = vmatprep.mubr.bf16.mxu0 0
      %863 = vmatmul.mubr.bf16.gmra.mxu0 %v818
      %v864 = vpop.f32.mrf.mxu0
      %v865 = vadd.f32 0.0, %v864
      %v866 = vpop.f32.mrf.mxu0
      %v867 = vadd.f32 0.0, %v866
      %v868 = vpop.f32.mrf.mxu0
      %v869 = vadd.f32 0.0, %v868
      %v870 = vpop.f32.mrf.mxu0
      %v871 = vadd.f32 0.0, %v870
      %872 = vdwg.mxu0
      %v873 = vmax.f32 %v855, 0.0
      %v874 = vmax.f32 %v857, 0.0
      %v875 = vmax.f32 %v859, 0.0
      %v876 = vmax.f32 %v861, 0.0
      %v877 = vmax.f32 %v865, 0.0
      %v878 = vmax.f32 %v867, 0.0
      %v879 = vmax.f32 %v869, 0.0
      %v880 = vmax.f32 %v871, 0.0
      %v881 = vld [vmem:[%s6] sm:$0xf]
      %v882 = vld [vmem:[%s6 + $0x4] sm:$0xf]
      %v883 = vld [vmem:[%s6 + $0x8] sm:$0xf]
      %v884 = vld [vmem:[%s6 + $0xc] sm:$0xf]
      %v885 = vld [vmem:[%s6 + $0x10] sm:$0xf]
      %v886 = vld [vmem:[%s6 + $0x14] sm:$0xf]
      %v887 = vld [vmem:[%s6 + $0x18] sm:$0xf]
      %v888 = vld [vmem:[%s6 + $0x1c] sm:$0xf]
      %v889 = vld [vmem:[%s6 + $0x20] sm:$0xf]
      %v890 = vld [vmem:[%s6 + $0x24] sm:$0xf]
      %v891 = vld [vmem:[%s6 + $0x28] sm:$0xf]
      %v892 = vld [vmem:[%s6 + $0x2c] sm:$0xf]
      %v893 = vld [vmem:[%s6 + $0x30] sm:$0xf]
      %v894 = vld [vmem:[%s6 + $0x34] sm:$0xf]
      %v895 = vld [vmem:[%s6 + $0x38] sm:$0xf]
      %v896 = vld [vmem:[%s6 + $0x3c] sm:$0xf]
      %v897 = vpack.c.bf16 %v875, %v873
      %v898 = vpack.c.bf16 %v876, %v874
      %v899 = vpack.c.bf16 %v879, %v877
      %v900 = vpack.c.bf16 %v880, %v878
      %v901 = vld [vmem:[%s7] sm:$0xff]
      %v902 = vld [vmem:[%s7 + $0x8] sm:$0xff]
      %v903 = vld [vmem:[%s7 + $0x10] sm:$0xff]
      %v904 = vld [vmem:[%s7 + $0x18] sm:$0xff]
      %v905 = vld [vmem:[%s7 + $0x20] sm:$0xff]
      %v906 = vld [vmem:[%s7 + $0x28] sm:$0xff]
      %v907 = vld [vmem:[%s7 + $0x30] sm:$0xff]
      %v908 = vld [vmem:[%s7 + $0x38] sm:$0xff]
      %v909 = vld [vmem:[%s7 + $0x40] sm:$0xff]
      %v910 = vld [vmem:[%s7 + $0x48] sm:$0xff]
      %v911 = vld [vmem:[%s7 + $0x50] sm:$0xff]
      %v912 = vld [vmem:[%s7 + $0x58] sm:$0xff]
      %v913 = vld [vmem:[%s7 + $0x60] sm:$0xff]
      %v914 = vld [vmem:[%s7 + $0x68] sm:$0xff]
      %v915 = vld [vmem:[%s7 + $0x70] sm:$0xff]
      %v916 = vld [vmem:[%s7 + $0x78] sm:$0xff]
      %918 = vset.pattern.permute.xlu0 0
      %919 = vperm.xlu0 %918, %v901
      %v920 = vpop.permute.xlu0 %919
      %923 = vset.pattern.permute.xlu0 0
      %924 = vperm.xlu0 %923, %v902
      %v925 = vpop.permute.xlu0 %924
      %928 = vset.pattern.permute.xlu0 0
      %929 = vperm.xlu0 %928, %v903
      %v930 = vpop.permute.xlu0 %929
      %933 = vset.pattern.permute.xlu0 0
      %934 = vperm.xlu0 %933, %v904
      %v935 = vpop.permute.xlu0 %934
      %938 = vset.pattern.permute.xlu0 0
      %939 = vperm.xlu0 %938, %v905
      %v940 = vpop.permute.xlu0 %939
      %943 = vset.pattern.permute.xlu0 0
      %944 = vperm.xlu0 %943, %v906
      %v945 = vpop.permute.xlu0 %944
      %948 = vset.pattern.permute.xlu0 0
      %949 = vperm.xlu0 %948, %v907
      %v950 = vpop.permute.xlu0 %949
      %953 = vset.pattern.permute.xlu0 0
      %954 = vperm.xlu0 %953, %v908
      %v955 = vpop.permute.xlu0 %954
      %958 = vset.pattern.permute.xlu0 0
      %959 = vperm.xlu0 %958, %v909
      %v960 = vpop.permute.xlu0 %959
      %963 = vset.pattern.permute.xlu0 0
      %964 = vperm.xlu0 %963, %v910
      %v965 = vpop.permute.xlu0 %964
      %968 = vset.pattern.permute.xlu0 0
      %969 = vperm.xlu0 %968, %v911
      %v970 = vpop.permute.xlu0 %969
      %973 = vset.pattern.permute.xlu0 0
      %974 = vperm.xlu0 %973, %v912
      %v975 = vpop.permute.xlu0 %974
      %978 = vset.pattern.permute.xlu0 0
      %979 = vperm.xlu0 %978, %v913
      %v980 = vpop.permute.xlu0 %979
      %983 = vset.pattern.permute.xlu0 0
      %984 = vperm.xlu0 %983, %v914
      %v985 = vpop.permute.xlu0 %984
      %988 = vset.pattern.permute.xlu0 0
      %989 = vperm.xlu0 %988, %v915
      %v990 = vpop.permute.xlu0 %989
      %993 = vset.pattern.permute.xlu0 0
      %994 = vperm.xlu0 %993, %v916
      %v995 = vpop.permute.xlu0 %994
      %v1013 = vunpack.c.l.b16 %v881
      %v1014 = vunpack.c.l.b16 %v882
      %v1015 = vunpack.c.l.b16 %v883
      %v1016 = vunpack.c.l.b16 %v884
      %v1017 = vunpack.c.l.b16 %v885
      %v1018 = vunpack.c.l.b16 %v886
      %v1019 = vunpack.c.l.b16 %v887
      %v1020 = vunpack.c.l.b16 %v888
      %v1021 = vunpack.c.l.b16 %v889
      %v1022 = vunpack.c.l.b16 %v890
      %v1023 = vunpack.c.l.b16 %v891
      %v1024 = vunpack.c.l.b16 %v892
      %v1025 = vunpack.c.l.b16 %v893
      %v1026 = vunpack.c.l.b16 %v894
      %v1027 = vunpack.c.l.b16 %v895
      %v1028 = vunpack.c.l.b16 %v896
      %v1029 = vpack.c.b16 %v1014, %v1013
      %v1030 = vpack.c.b16 %v1016, %v1015
      %v1031 = vpack.c.b16 %v1018, %v1017
      %v1032 = vpack.c.b16 %v1020, %v1019
      %v1033 = vpack.c.b16 %v1022, %v1021
      %v1034 = vpack.c.b16 %v1024, %v1023
      %v1035 = vpack.c.b16 %v1026, %v1025
      %v1036 = vpack.c.b16 %v1028, %v1027
      %v1038 = vsel %vm712, %v1029, 0
      %v1041 = vsel %vm712, %v1030, 0
      %v1044 = vsel %vm712, %v1031, 0
      %v1047 = vsel %vm712, %v1032, 0
      %v1050 = vsel %vm712, %v1033, 0
      %v1053 = vsel %vm712, %v1034, 0
      %v1056 = vsel %vm712, %v1035, 0
      %v1059 = vsel %vm712, %v1036, 0
      %1061 = vmatprep.subr.bf16.mxu0 0
      %1062 = vmatpush1.bf16.msra.mxu0 0
      %1063 = vmatprep.subr.bf16.mxu0 0
      %1064 = vmatpush1.bf16.msra.mxu0 0
      %1065 = vmatprep.subr.bf16.mxu0 0
      %1066 = vmatpush1.bf16.msra.mxu0 0
      %1067 = vmatprep.subr.bf16.mxu0 0
      %1068 = vmatpush1.bf16.msra.mxu0 0
      %1069 = vmatprep.subr.bf16.mxu0 0
      %1070 = vmatpush1.bf16.msra.mxu0 0
      %1071 = vmatprep.subr.bf16.mxu0 0
      %1072 = vmatpush1.bf16.msra.mxu0 0
      %1073 = vmatprep.subr.bf16.mxu0 %v900
      %1074 = vmatpush1.bf16.msra.mxu0 %v899
      %1075 = vmatprep.subr.bf16.mxu0 %v898
      %1076 = vmatpush1.bf16.msra.mxu0 %v897
      %1077 = vmatprep.subr.bf16.mxu0 0
      %1078 = vmatpush2.bf16.msra.mxu0 0
      %1079 = vmatprep.subr.bf16.mxu0 0
      %1080 = vmatpush2.bf16.msra.mxu0 0
      %1081 = vmatprep.subr.bf16.mxu0 0
      %1082 = vmatpush2.bf16.msra.mxu0 0
      %1083 = vmatprep.subr.bf16.mxu0 0
      %1084 = vmatpush2.bf16.msra.mxu0 0
      %1085 = vmatprep.subr.bf16.mxu0 0
      %1086 = vmatpush2.bf16.msra.mxu0 0
      %1087 = vmatprep.subr.bf16.mxu0 0
      %1088 = vmatpush2.bf16.msra.mxu0 0
      %1089 = vmatprep.subr.bf16.mxu0 0
      %1090 = vmatpush2.bf16.msra.mxu0 0
      %1091 = vmatprep.subr.bf16.mxu0 0
      %1092 = vmatpush2.bf16.msra.mxu0 0
      %1093 = vmatprep.mubr.bf16.mxu0 0
      %1094 = vmatmul.mubr.bf16.gmra.mxu0 %v1038
      %v1095 = vpop.f32.mrf.mxu0
      %v1096 = vadd.f32 %v920, %v1095
      %v1097 = vpop.f32.mrf.mxu0
      %v1098 = vadd.f32 %v920, %v1097
      %v1099 = vpop.f32.mrf.mxu0
      %v1100 = vadd.f32 %v925, %v1099
      %v1101 = vpop.f32.mrf.mxu0
      %v1102 = vadd.f32 %v925, %v1101
      %1103 = vmatprep.mubr.bf16.mxu0 0
      %1104 = vmatmul.mubr.bf16.gmra.mxu0 %v1041
      %v1105 = vpop.f32.mrf.mxu0
      %v1106 = vadd.f32 %v930, %v1105
      %v1107 = vpop.f32.mrf.mxu0
      %v1108 = vadd.f32 %v930, %v1107
      %v1109 = vpop.f32.mrf.mxu0
      %v1110 = vadd.f32 %v935, %v1109
      %v1111 = vpop.f32.mrf.mxu0
      %v1112 = vadd.f32 %v935, %v1111
      %1113 = vmatprep.mubr.bf16.mxu0 0
      %1114 = vmatmul.mubr.bf16.gmra.mxu0 %v1044
      %v1115 = vpop.f32.mrf.mxu0
      %v1116 = vadd.f32 %v940, %v1115
      %v1117 = vpop.f32.mrf.mxu0
      %v1118 = vadd.f32 %v940, %v1117
      %v1119 = vpop.f32.mrf.mxu0
      %v1120 = vadd.f32 %v945, %v1119
      %v1121 = vpop.f32.mrf.mxu0
      %v1122 = vadd.f32 %v945, %v1121
      %1123 = vmatprep.mubr.bf16.mxu0 0
      %1124 = vmatmul.mubr.bf16.gmra.mxu0 %v1047
      %v1125 = vpop.f32.mrf.mxu0
      %v1126 = vadd.f32 %v950, %v1125
      %v1127 = vpop.f32.mrf.mxu0
      %v1128 = vadd.f32 %v950, %v1127
      %v1129 = vpop.f32.mrf.mxu0
      %v1130 = vadd.f32 %v955, %v1129
      %v1131 = vpop.f32.mrf.mxu0
      %v1132 = vadd.f32 %v955, %v1131
      %1133 = vmatprep.mubr.bf16.mxu0 0
      %1134 = vmatmul.mubr.bf16.gmra.mxu0 %v1050
      %v1135 = vpop.f32.mrf.mxu0
      %v1136 = vadd.f32 %v960, %v1135
      %v1137 = vpop.f32.mrf.mxu0
      %v1138 = vadd.f32 %v960, %v1137
      %v1139 = vpop.f32.mrf.mxu0
      %v1140 = vadd.f32 %v965, %v1139
      %v1141 = vpop.f32.mrf.mxu0
      %v1142 = vadd.f32 %v965, %v1141
      %1143 = vmatprep.mubr.bf16.mxu0 0
      %1144 = vmatmul.mubr.bf16.gmra.mxu0 %v1053
      %v1145 = vpop.f32.mrf.mxu0
      %v1146 = vadd.f32 %v970, %v1145
      %v1147 = vpop.f32.mrf.mxu0
      %v1148 = vadd.f32 %v970, %v1147
      %v1149 = vpop.f32.mrf.mxu0
      %v1150 = vadd.f32 %v975, %v1149
      %v1151 = vpop.f32.mrf.mxu0
      %v1152 = vadd.f32 %v975, %v1151
      %1153 = vmatprep.mubr.bf16.mxu0 0
      %1154 = vmatmul.mubr.bf16.gmra.mxu0 %v1056
      %v1155 = vpop.f32.mrf.mxu0
      %v1156 = vadd.f32 %v980, %v1155
      %v1157 = vpop.f32.mrf.mxu0
      %v1158 = vadd.f32 %v980, %v1157
      %v1159 = vpop.f32.mrf.mxu0
      %v1160 = vadd.f32 %v985, %v1159
      %v1161 = vpop.f32.mrf.mxu0
      %v1162 = vadd.f32 %v985, %v1161
      %1163 = vmatprep.mubr.bf16.mxu0 0
      %1164 = vmatmul.mubr.bf16.gmra.mxu0 %v1059
      %v1165 = vpop.f32.mrf.mxu0
      %v1166 = vadd.f32 %v990, %v1165
      %v1167 = vpop.f32.mrf.mxu0
      %v1168 = vadd.f32 %v990, %v1167
      %v1169 = vpop.f32.mrf.mxu0
      %v1170 = vadd.f32 %v995, %v1169
      %v1171 = vpop.f32.mrf.mxu0
      %v1172 = vadd.f32 %v995, %v1171
      %1173 = vdwg.mxu0
      %1174 = vst [vmem:[%s305] sm:$0xff] %v1096
      %1175 = vst.msk [vmem:[%s305 + $0x8] sm:$0xff] %vm634, %v1098
      %1176 = vst [vmem:[%s305 + $0x10] sm:$0xff] %v1100
      %1177 = vst.msk [vmem:[%s305 + $0x18] sm:$0xff] %vm634, %v1102
      %1178 = vst [vmem:[%s305 + $0x20] sm:$0xff] %v1106
      %1179 = vst.msk [vmem:[%s305 + $0x28] sm:$0xff] %vm634, %v1108
      %1180 = vst [vmem:[%s305 + $0x30] sm:$0xff] %v1110
      %1181 = vst.msk [vmem:[%s305 + $0x38] sm:$0xff] %vm634, %v1112
      %1182 = vst [vmem:[%s305 + $0x40] sm:$0xff] %v1116
      %1183 = vst.msk [vmem:[%s305 + $0x48] sm:$0xff] %vm634, %v1118
      %1184 = vst [vmem:[%s305 + $0x50] sm:$0xff] %v1120
      %1185 = vst.msk [vmem:[%s305 + $0x58] sm:$0xff] %vm634, %v1122
      %1186 = vst [vmem:[%s305 + $0x60] sm:$0xff] %v1126
      %1187 = vst.msk [vmem:[%s305 + $0x68] sm:$0xff] %vm634, %v1128
      %1188 = vst [vmem:[%s305 + $0x70] sm:$0xff] %v1130
      %1189 = vst.msk [vmem:[%s305 + $0x78] sm:$0xff] %vm634, %v1132
      %1190 = vst [vmem:[%s305 + $0x80] sm:$0xff] %v1136
      %1191 = vst.msk [vmem:[%s305 + $0x88] sm:$0xff] %vm634, %v1138
      %1192 = vst [vmem:[%s305 + $0x90] sm:$0xff] %v1140
      %1193 = vst.msk [vmem:[%s305 + $0x98] sm:$0xff] %vm634, %v1142
      %1194 = vst [vmem:[%s305 + $0xa0] sm:$0xff] %v1146
      %1195 = vst.msk [vmem:[%s305 + $0xa8] sm:$0xff] %vm634, %v1148
      %1196 = vst [vmem:[%s305 + $0xb0] sm:$0xff] %v1150
      %1197 = vst.msk [vmem:[%s305 + $0xb8] sm:$0xff] %vm634, %v1152
      %1198 = vst [vmem:[%s305 + $0xc0] sm:$0xff] %v1156
      %1199 = vst.msk [vmem:[%s305 + $0xc8] sm:$0xff] %vm634, %v1158
      %1200 = vst [vmem:[%s305 + $0xd0] sm:$0xff] %v1160
      %1201 = vst.msk [vmem:[%s305 + $0xd8] sm:$0xff] %vm634, %v1162
      %1202 = vst [vmem:[%s305 + $0xe0] sm:$0xff] %v1166
      %1203 = vst.msk [vmem:[%s305 + $0xe8] sm:$0xff] %vm634, %v1168
      %1204 = vst [vmem:[%s305 + $0xf0] sm:$0xff] %v1170
      %1205 = vst.msk [vmem:[%s305 + $0xf8] sm:$0xff] %vm634, %v1172
      %p1206 = scmp.lt.s32.totalorder %s19, 1
      %s1207 = scalar_select %p1206, %s19, 1
      %s1208 = smul.addr %s1207, 32
      %s1209 = smul.addr %s1208, 8
      %s1210 = scalar_lea.vmem %s8, %s1209
      // Predicated region
      $region53: #{sandwich_gnn_forward.1} parent=51 // pred_check
        %p1211 = pneg %p210
      $region54: #{sandwich_gnn_forward.1} parent=51 // pred_check_branch
        %1213 = sbr.rel (%p1211) target = $region56
      $region55: #{sandwich_gnn_forward.1} parent=51 // pred_region
        _
      $region56: #{sandwich_gnn_forward.1} parent=51 // pred_fallthru
        _
    $region52: #{sandwich_gnn_forward.1} parent=5 // pred_fallthru
      _
    %p1214 = scmp.le.s32.totalorder 2, %s14
    // Predicated region
    $region57: #{sandwich_gnn_forward.1} parent=5 // pred_check
      %p1215 = pneg %p1214
    $region58: #{sandwich_gnn_forward.1} parent=5 // pred_check_branch
      %1217 = sbr.rel (%p1215) target = $region60
    $region59: #{sandwich_gnn_forward.1} parent=5 // pred_region
      %s1218 = ssub.s32 %s14, 2
      // Predicated region
      $region61: #{sandwich_gnn_forward.1} parent=59 // pred_check
        %p1219 = pneg %p216
      $region62: #{sandwich_gnn_forward.1} parent=59 // pred_check_branch
        %1221 = sbr.rel (%p1219) target = $region64
      $region63: #{sandwich_gnn_forward.1} parent=59 // pred_region
        %p1222 = scmp.lt.s32.totalorder %s20, 1
        %s1223 = scalar_select %p1222, %s20, 1
        %s1224 = smul.addr %s1223, 32
        %s1225 = smul.addr %s1224, 8
        %s1226 = scalar_lea.vmem %s8, %s1225
      $region64: #{sandwich_gnn_forward.1} parent=59 // pred_fallthru
        _
    $region60: #{sandwich_gnn_forward.1} parent=5 // pred_fallthru
      _
  $region6: #{sandwich_gnn_forward.1} parent=0 // loop_footer
    %s18 = sadd.s32 1, %s14
  $region7: #{sandwich_gnn_forward.1} parent=0 // loop_footer_branch
    %13 = sbr.rel target = $region3
  $region8: #{sandwich_gnn_forward.1} parent=0 // loop_exit
    _

</llo_original>
